<compile_context>
chip_gen: v7x
topology: tpu7x:2x2x1
jax: 0.10.0
libtpu: 0.0.40
codegen_flags: <defaults>
</compile_context>

<pallas_src>
import functools

import jax
import jax.numpy as jnp
from jax import lax
from jax.experimental import pallas as pl
from jax.experimental.pallas import tpu as pltpu

LANES = 128


def _single_block_kernel(x_ref, y_ref, dx_ref, o_ref, *, inv_n):
    """Whole problem in one VMEM block: mean(dx^2 - cos(4x)*y) -> SMEM scalar."""
    x = x_ref[...].astype(jnp.float32)
    y = y_ref[...].astype(jnp.float32)
    dx = dx_ref[...].astype(jnp.float32)
    val = dx * dx - jnp.cos(4.0 * x) * y
    o_ref[0, 0] = jnp.sum(val) * inv_n


def _tiled_sum_kernel(x_ref, y_ref, dx_ref, o_ref, *, rows, steps, acc_rows):
    """Per-tile partial sums into a resident (acc_rows, 128) f32 accumulator."""
    c = pl.program_id(0)          # independent split ("parallel")
    j = pl.program_id(1)          # reduction axis ("arbitrary")
    tile_rows = x_ref.shape[0]

    @pl.when(j == 0)
    def _init():
        o_ref[...] = jnp.zeros_like(o_ref)

    x = x_ref[...].astype(jnp.float32)
    y = y_ref[...].astype(jnp.float32)
    dx = dx_ref[...].astype(jnp.float32)
    val = dx * dx - jnp.cos(4.0 * x) * y            # (tile_rows, 128)

    # Valid rows of this (unclamped) block; 0 for overhang (duplicate) blocks.
    b = c * steps + j
    valid = jnp.clip(rows - b * tile_rows, 0, tile_rows)

    @pl.when(valid == tile_rows)                    # common case: no masking
    def _full():
        # Sublane-folded partial reduction: pure VALU vreg adds spread over
        # 8 independent accumulator vregs (no XLU, no scalar RMW chain).
        o_ref[...] += val.reshape(-1, acc_rows, LANES).sum(axis=0)

    @pl.when(valid < tile_rows)                     # ragged / overhang block
    def _partial():
        row = lax.broadcasted_iota(jnp.int32, val.shape, 0)
        o_ref[...] += jnp.where(row < valid, val, 0.0).reshape(
            -1, acc_rows, LANES).sum(axis=0)


def _as_lane_major(flat, rows):
    """(n,) -> (rows, 128); pads <=127 zeros only when n % 128 != 0."""
    padded = rows * LANES
    if padded != flat.shape[0]:
        # Zeros contribute exactly 0 to the sum (0**2 - cos(0)*0 == 0).
        # NOTE: this <=127-element pad is the only remaining wrapper copy; for
        # 128-aligned sizes the reshape below is a free bitcast.
        flat = jnp.pad(flat, (0, padded - flat.shape[0]))
    return flat.reshape(rows, LANES)


def pde_loss(x, y, dx, x_=None, x_b=None, *, tile_rows=2048, n_splits=1,
             fast_path_rows=4096):
    """Pallas equivalent of Loss.forward(x, y, dx, x_, x_b).

    Returns a scalar float32: mean(dx**2 - cos(4*x) * y).
    x_, x_b are unused (dead code after `return` in the reference module).
    """
    del x_, x_b  # unreachable boundary term in the reference implementation
    assert x.shape == y.shape == dx.shape, "x, y, dx must share a shape"
    assert tile_rows % 8 == 0 and tile_rows > 0

    n_total = int(x.size)
    rows = -(-n_total // LANES)
    x2 = _as_lane_major(x.reshape(-1), rows)
    y2 = _as_lane_major(y.reshape(-1), rows)
    dx2 = _as_lane_major(dx.reshape(-1), rows)

    n_padded = rows * LANES
    cost = pl.CostEstimate(
        flops=6 * n_padded,
        transcendentals=n_padded,
        bytes_accessed=3 * n_padded * x2.dtype.itemsize,
    )

    # ---------------- gridless single-block fast path -------------------------
    if rows <= max(fast_path_rows, tile_rows):
        out = pl.pallas_call(
            functools.partial(_single_block_kernel, inv_n=1.0 / n_total),
            out_shape=jax.ShapeDtypeStruct((1, 1), jnp.float32),
            out_specs=pl.BlockSpec(memory_space=pltpu.MemorySpace.SMEM),
            cost_estimate=cost,
        )(x2, y2, dx2)
        return out[0, 0]

    # ---------------- tiled streaming-reduction path --------------------------
    acc_rows = 64
    while tile_rows % acc_rows:
        acc_rows //= 2

    num_blocks = -(-rows // tile_rows)          # rows > tile_rows here
    n_splits = max(1, min(int(n_splits), num_blocks))
    steps = -(-num_blocks // n_splits)

    def in_idx(c, j):
        # Clamp so overhang blocks (when num_blocks % n_splits != 0) DMA valid
        # memory; the kernel masks their contribution to exactly zero.
        return (jnp.minimum(c * steps + j, num_blocks - 1), 0)

    in_spec = pl.BlockSpec((tile_rows, LANES), in_idx)
    # One resident (acc_rows, 128) accumulator block per split; constant along
    # the reduction axis j.
    out_spec = pl.BlockSpec((acc_rows, LANES), lambda c, j: (c, 0))

    partial_sums = pl.pallas_call(
        functools.partial(_tiled_sum_kernel, rows=rows, steps=steps,
                          acc_rows=acc_rows),
        out_shape=jax.ShapeDtypeStruct((n_splits * acc_rows, LANES),
                                       jnp.float32),
        grid_spec=pltpu.PrefetchScalarGridSpec(
            num_scalar_prefetch=0,
            grid=(n_splits, steps),
            in_specs=[in_spec, in_spec, in_spec],
            out_specs=out_spec,
        ),
        # 3 inputs x 2 bufs x 1 MiB (tile_rows=2048) = 6 MiB: well under the
        # default scoped-VMEM limit on v5e/v6e/v7x, so no vmem override needed.
        compiler_params=pltpu.CompilerParams(
            dimension_semantics=("parallel", "arbitrary"),
        ),
        cost_estimate=cost,
    )(x2, y2, dx2)

    # Tiny finalize in XLA: cross-lane reduce of n_splits*64*128 partials.
    return jnp.sum(partial_sums) / jnp.float32(n_total)


def pde_loss_ref(x, y, dx):
    """Pure-JAX reference for correctness checking."""
    x = x.astype(jnp.float32)
    y = y.astype(jnp.float32)
    dx = dx.astype(jnp.float32)
    return jnp.mean(dx ** 2 - jnp.cos(4.0 * x) * y)


if __name__ == "__main__":
    key = jax.random.PRNGKey(0)
    ks = jax.random.split(key, 11)

    # --- Case 1: small low-D collocation batch -> gridless fast path --------
    N, D = 64, 2
    x = jax.random.uniform(ks[0], (N, D), jnp.float32, -1.0, 1.0)
    y = jax.random.normal(ks[1], (N, D), jnp.float32)
    dx = jax.random.normal(ks[2], (N, D), jnp.float32)
    x_ = jax.random.normal(ks[3], (N, D), jnp.float32)                # unused
    x_b = jax.random.uniform(ks[4], (N, D), jnp.float32, -1.0, 1.0)   # unused

    out1 = jax.block_until_ready(pde_loss(x, y, dx, x_, x_b))
    ref1 = jax.block_until_ready(pde_loss_ref(x, y, dx))
    assert jnp.allclose(out1, ref1, rtol=1e-4, atol=1e-4), (out1, ref1)

    # --- Case 2: ragged 1-D input (50,000 elems, not a multiple of 128) -----
    # Forced onto the tiled path: exercises the <=127-elem pad and the
    # in-kernel ragged-last-block mask.
    M = 50_000
    xb = jax.random.uniform(ks[5], (M,), jnp.float32, -1.0, 1.0)
    yb = jax.random.normal(ks[6], (M,), jnp.float32)
    dxb = jax.random.normal(ks[7], (M,), jnp.float32)

    out2 = jax.block_until_ready(
        pde_loss(xb, yb, dxb, tile_rows=128, fast_path_rows=64))
    ref2 = jax.block_until_ready(pde_loss_ref(xb, yb, dxb))
    assert jnp.allclose(out2, ref2, rtol=1e-4, atol=1e-4), (out2, ref2)

    # --- Case 3: 128-aligned input with n_splits=2 (v7x-style split) --------
    # 7 blocks do not divide evenly across 2 splits: exercises the clamped
    # overhang block, which must contribute exactly zero.
    M3 = 7 * 128 * LANES
    xc = jax.random.uniform(ks[8], (M3,), jnp.float32, -1.0, 1.0)
    yc = jax.random.normal(ks[9], (M3,), jnp.float32)
    dxc = jax.random.normal(ks[10], (M3,), jnp.float32)

    out3 = jax.block_until_ready(
        pde_loss(xc, yc, dxc, tile_rows=128, n_splits=2, fast_path_rows=64))
    ref3 = jax.block_until_ready(pde_loss_ref(xc, yc, dxc))
    assert jnp.allclose(out3, ref3, rtol=1e-4, atol=1e-4), (out3, ref3)

    print("KERNEL_OK")
</pallas_src>

<mosaic_0001>
module attributes {stable_mosaic.version = 11 : i64} {
  func.func @_single_block_kernel(%arg0: memref<1x128xf32, #tpu.memory_space<vmem>>, %arg1: memref<1x128xf32, #tpu.memory_space<vmem>>, %arg2: memref<1x128xf32, #tpu.memory_space<vmem>>, %arg3: memref<1x1xf32, #tpu.memory_space<smem>>) attributes {dimension_semantics = [], scalar_prefetch = 0 : i64, scratch_operands = 0 : i64, tpu.core_type = #tpu.core_type<tc>} {
    %c0 = arith.constant 0 : index
    %c0_0 = arith.constant 0 : index
    %0 = vector.load %arg0[%c0, %c0_0] : memref<1x128xf32, #tpu.memory_space<vmem>>, vector<1x128xf32>
    %c0_1 = arith.constant 0 : index
    %c0_2 = arith.constant 0 : index
    %1 = vector.load %arg1[%c0_1, %c0_2] : memref<1x128xf32, #tpu.memory_space<vmem>>, vector<1x128xf32>
    %c0_3 = arith.constant 0 : index
    %c0_4 = arith.constant 0 : index
    %2 = vector.load %arg2[%c0_3, %c0_4] : memref<1x128xf32, #tpu.memory_space<vmem>>, vector<1x128xf32>
    %3 = arith.mulf %2, %2 : vector<1x128xf32>
    %cst = arith.constant 4.000000e+00 : f32
    %4 = vector.broadcast %cst : f32 to vector<1x128xf32>
    %5 = arith.mulf %4, %0 : vector<1x128xf32>
    %6 = math.cos %5 : vector<1x128xf32>
    %7 = arith.mulf %6, %1 : vector<1x128xf32>
    %8 = arith.subf %3, %7 : vector<1x128xf32>
    %9 = vector.shape_cast %8 : vector<1x128xf32> to vector<1x1x128xf32>
    %cst_5 = arith.constant dense<0.000000e+00> : vector<1xf32>
    %10 = vector.multi_reduction <add>, %9, %cst_5 [1, 2] : vector<1x1x128xf32> to vector<1xf32>
    %11 = vector.shape_cast %10 : vector<1xf32> to vector<1x1x1xf32>
    %12 = vector.extract %11[0, 0, 0] : f32 from vector<1x1x1xf32>
    %cst_6 = arith.constant 7.812500e-03 : f32
    %13 = arith.mulf %12, %cst_6 : f32
    %c0_7 = arith.constant 0 : index
    %c0_8 = arith.constant 0 : index
    %14 = memref.load %arg3[%c0_7, %c0_8] : memref<1x1xf32, #tpu.memory_space<smem>>
    memref.store %13, %arg3[%c0_7, %c0_8] : memref<1x1xf32, #tpu.memory_space<smem>>
    return
  }
}

</mosaic_0001>

<llo_original>
// kernel: tpu_custom_call.1
$region0: #{tpu_custom_call.1}
  #allocation0 [shape = 'u32[]', space=smem, size = 0x4, offset = 0x4, fixed_abs, tag = 'smem constant byte address 0x4 - core index']
  #allocation1 [shape = 'u32[144,128]{1,0:T(1,128)}', space=vmem, size = 0x12000, scoped, tag = 'internal scratch']
  %s0 = inlined_call_operand.hbm [shape: f32[1,128], index: 0, kind: input, shape index: {}]
  %s1 = inlined_call_operand.vmem [shape: f32[1,128], index: 1, kind: input, shape index: {}]
  %s2 = inlined_call_operand.vmem [shape: f32[1,128], index: 2, kind: input, shape index: {}]
  %s3 = inlined_call_operand.hbm [shape: f32[1,1], index: 3, kind: output, shape index: {}]
  %s4 = sld [smem:[#allocation0]]
  $region26: #{tpu_custom_call.1} parent=0
    _
  %s6 = ssub.s32 1, %s4
  %s7 = scalar_select 0, %s6, %s4
  $region1: #{tpu_custom_call.1} parent=0
    #allocation2 [shape = 'u8[512]{0}', space=vmem, size = 0x400, scoped, tag = 'input window, operand 0, single buffered']
    #allocation3 [shape = 's32[1]{0}', space=sflag, size = 0x4, scoped, tag = 'scoped memory for tpu_custom_call.1']
    #allocation4 [shape = 's32[1]{0}', space=sflag, size = 0x4, scoped, tag = 'scoped memory for tpu_custom_call.1']
    #allocation5 [shape = 'u8[512]{0}', space=smem, size = 0x200, scoped, tag = 'output window, operand 0, single buffered']
    %8 = vsyncpa [#allocation3], 0
    %9 = vsyncpa [#allocation4], 0
    // Predicated region
    $region2: #{tpu_custom_call.1} parent=1 // pred_check
      _
    $region3: #{tpu_custom_call.1} parent=1 // pred_check_branch
      %11 = sbr.rel (0) target = $region5
    $region4: #{tpu_custom_call.1} parent=1 // pred_region
      %s13 = ssub.s32 16, 16
      %14 = vsyncadd [#allocation3], %s13
      %s16 = sshll.u32 [#allocation2], 4
      %s17 = int_to_ptr.vmem [resolvable:$true] %s16
      %19 = dma.hbm_to_vmem [thread:$0]  %s0, 16, %s17, [#allocation3]
    $region5: #{tpu_custom_call.1} parent=1 // pred_fallthru
      _
    // Predicated region
    $region6: #{tpu_custom_call.1} parent=1 // pred_check
      _
    $region7: #{tpu_custom_call.1} parent=1 // pred_check_branch
      %21 = sbr.rel (0) target = $region9
    $region8: #{tpu_custom_call.1} parent=1 // pred_region
      _
    $region9: #{tpu_custom_call.1} parent=1 // pred_fallthru
      _
    // Predicated region
    $region10: #{tpu_custom_call.1} parent=1 // pred_check
      _
    $region11: #{tpu_custom_call.1} parent=1 // pred_check_branch
      %23 = sbr.rel (0) target = $region13
    $region12: #{tpu_custom_call.1} parent=1 // pred_region
      _
    $region13: #{tpu_custom_call.1} parent=1 // pred_fallthru
      _
    // Predicated region
    $region14: #{tpu_custom_call.1} parent=1 // pred_check
      _
    $region15: #{tpu_custom_call.1} parent=1 // pred_check_branch
      %25 = sbr.rel (0) target = $region17
    $region16: #{tpu_custom_call.1} parent=1 // pred_region
      %26 = dma.done [#allocation3], 16
    $region17: #{tpu_custom_call.1} parent=1 // pred_fallthru
      _
    %v27 = vld [vmem:[#allocation2] sm:$0x1]
    %v28 = vld [vmem:[%s1] sm:$0x1]
    %v29 = vld [vmem:[%s2] sm:$0x1]
    %v30 = vmul.f32 %v29, %v29
    %v31 = vmul.f32 %v27, 4.0
    %v32 = vand.u32 2147483647, %v31
    %vm33 = vcmp.le.f32.partialorder %v32, 0.7853982
    %vm34 = vcmp.lt.s32.totalorder %v31, 0
    %v35 = vand.u32 %v31, 2139095040
    %v36 = vshrl.u32 %v35, 23
    %v37 = vsub.s32 %v36, 127
    %v38 = vand.u32 2147483647, %v31
    %v39 = vand.u32 %v38, 8388607
    %v40 = vor.u32 %v39, 8388608
    %v41 = vsub.s32 0, %v40
    %v42 = vadd.s32 %v37, 1
    %vm43 = vcmp.gt.s32.totalorder %v42, 0
    %v44 = vsel %vm43, %v42, 0
    %v45 = vshrl.u32 %v44, 5
    %v46 = vand.u32 %v44, 31
    %v47 = vsub.s32 32, %v46
    %v48 = vshrl.u32 683565275, %v47
    %v49 = vshll.u32 683565275, %v46
    %v50 = vshrl.u32 2475754826, %v47
    %v51 = vor.u32 %v49, %v50
    %v52 = vshll.u32 2475754826, %v46
    %v53 = vshrl.u32 2131351028, %v47
    %v54 = vor.u32 %v52, %v53
    %v55 = vshll.u32 2131351028, %v46
    %v56 = vshrl.u32 2102212464, %v47
    %v57 = vor.u32 %v55, %v56
    %v58 = vshll.u32 2102212464, %v46
    %v59 = vshrl.u32 920167782, %v47
    %v60 = vor.u32 %v58, %v59
    %v61 = vshll.u32 920167782, %v46
    %v62 = vshrl.u32 1326507024, %v47
    %v63 = vor.u32 %v61, %v62
    %vm64 = vcmp.lt.s32.totalorder %v45, 1
    %vm65 = vcmp.lt.s32.totalorder %v45, 2
    %vm66 = vcmp.lt.s32.totalorder %v45, 3
    %vm67 = vcmp.lt.s32.totalorder %v45, 4
    %v68 = vsel %vm64, %v48, %v51
    %v69 = vsel %vm67, %v57, 2102212464
    %v70 = vsel %vm66, %v54, %v69
    %v71 = vsel %vm65, %v68, %v70
    %v72 = vsel %vm64, %v51, %v54
    %v73 = vsel %vm67, %v60, 920167782
    %v74 = vsel %vm66, %v57, %v73
    %v75 = vsel %vm65, %v72, %v74
    %v76 = vsel %vm64, %v54, %v57
    %v77 = vsel %vm67, %v63, 1326507024
    %v78 = vsel %vm66, %v60, %v77
    %v79 = vsel %vm65, %v76, %v78
    %v80 = vshll.u32 %v40, 8
    %v81 = vmul.u32.u64.compose %v80, %v79
    %v82 = vextract.low.u32 %v81
    %v83 = vextract.high.u32 %v81
    %v84 = vmul.u32.u64.compose %v80, %v75
    %v85 = vextract.low.u32 %v84
    %v86 = vextract.high.u32 %v84
    %v87 = vmul.u32 %v80, %v71
    %v88 = vadd.s32 %v83, %v85
    %vm89 = vc.u32 %v83, %v85
    %v90 = vadd.s32 %v86, 1
    %v91 = vsel %vm89, %v90, %v86
    %v92 = vadd.s32 %v87, %v91
    %v93 = vadd.s32 %v92, 536870912
    %v94 = vshrl.u32 %v93, 30
    %v95 = vshll.u32 %v94, 30
    %v96 = vsub.s32 %v92, %v95
    %vm97 = vcmp.lt.s32.totalorder %v96, 0
    %v98 = vsub.s32 0, %v96
    %v99 = vsel %vm97, %v98, %v96
    %v100 = vclz %v99
    %v101 = vsub.s32 %v100, 2
    %vm102 = vcmp.gt.s32.totalorder 0, %v101
    %v103 = vsel %vm102, 0, %v101
    %v104 = vsub.s32 32, %v103
    %v105 = vshll.u32 %v96, %v103
    %v106 = vshrl.u32 %v88, %v104
    %v107 = vor.u32 %v105, %v106
    %v108 = vsub.s32 4294967266, %v103
    %v109 = vadd.s32 %v108, 127
    %v110 = vshll.u32 %v109, 23
    %v111 = vor.u32 4788187, %v110
    %v112 = vand.u32 2147483647, %v111
    %v114 = vcvt.s32.f32 %v107
    %v115 = vmul.f32 %v114, %v112
    %v116 = vxor.u32 %v115, 2147483648
    %v117 = vsel %vm34, %v116, %v115
    %v118 = vsub.s32 4, %v94
    %v119 = vsel %vm34, %v118, %v94
    %v120 = vsel %vm33, %v31, %v117
    %v121 = vsel %vm33, 0, %v119
    %v122 = vcosq.f32.pop %v120
    %v123 = vsinq.f32.pop %v120
    %vm124 = vweird.f32 %v31
    %v125 = vand.u32 %v121, 3
    %vm126 = vcmp.lt.s32.totalorder %v125, 2
    %vm127 = vcmp.eq.s32.totalorder %v125, 0
    %v128 = vxor.u32 %v123, 2147483648
    %v129 = vsel %vm127, %v122, %v128
    %vm130 = vcmp.eq.s32.totalorder %v125, 2
    %v131 = vxor.u32 %v122, 2147483648
    %v132 = vsel %vm130, %v131, %v123
    %v133 = vsel %vm126, %v129, %v132
    %v134 = vsel %vm124, nan, %v133
    %v135 = vmul.f32 %v134, %v28
    %v136 = vsub.f32 %v30, %v135
    %vm137 = vcmask 1040384
    %v138 = vsel %vm137, %v136, 0.0
    %139 = vadd.xlane.f32.xlu0 %v138
    %v140 = vpop.xlane.xlu0 %139
    %v141 = vrot.slane %v140, 4
    %v142 = vadd.f32 %v140, %v141
    %v143 = vrot.slane %v142, 2
    %v144 = vadd.f32 %v142, %v143
    %v145 = vrot.slane %v144, 1
    %v146 = vadd.f32 %v144, %v145
    %s147 = vtos %v146
    %s148 = smul.f32 %s147, 0.0078125
    %s149 = scalar_lea.smem [#allocation5], 0
    %150 = sst [smem:[%s149]] %s148
    // Predicated region
    $region18: #{tpu_custom_call.1} parent=1 // pred_check
      _
    $region19: #{tpu_custom_call.1} parent=1 // pred_check_branch
      %152 = sbr.rel (0) target = $region21
    $region20: #{tpu_custom_call.1} parent=1 // pred_region
      %s154 = ssub.s32 16, 16
      %155 = vsyncadd [#allocation4], %s154
      %158 = dma.smem_to_hbm [#allocation5], 16, %s3, [#allocation4]
    $region21: #{tpu_custom_call.1} parent=1 // pred_fallthru
      _
    // Predicated region
    $region22: #{tpu_custom_call.1} parent=1 // pred_check
      _
    $region23: #{tpu_custom_call.1} parent=1 // pred_check_branch
      %160 = sbr.rel (0) target = $region25
    $region24: #{tpu_custom_call.1} parent=1 // pred_region
      %161 = dma.done [#allocation4], 16
    $region25: #{tpu_custom_call.1} parent=1 // pred_fallthru
      _
    %162 = sfence
    %163 = vsyncpa [#allocation3], 1
    %164 = vsyncpa [#allocation4], 1

</llo_original>
